<compile_context>
chip_gen: v7x
topology: tpu7x:2x2x1
jax: 0.10.0
libtpu: 0.0.40
codegen_flags: <defaults>
</compile_context>

<pallas_src>
import functools

import jax
import jax.numpy as jnp
from jax import lax
from jax.experimental import pallas as pl
from jax.experimental.pallas import tpu as pltpu


def _fused_conv_bn_act_kernel(lhs_ref, m_ref, gamma_ref, beta_ref, out_ref, *,
                              cout, eps):
    """Fused 3x3 conv (one MXU matmul) + BatchNorm(train) + LeakyReLU.

    lhs_ref:   (N*H, 3*Wp*Cin)  bf16   pre-concatenated padded input rows
    m_ref:     (3*Wp*Cin, W*Cout) bf16 block-Toeplitz conv weights
    gamma/beta:(1, W*Cout)      f32    BN affine params tiled over the W lanes
    out_ref:   (N*H, W*Cout)    f32    flat NHWC output
    """
    # One MXU matmul, f32 accumulation.
    conv = jnp.dot(lhs_ref[...], m_ref[...], preferred_element_type=jnp.float32)

    m_rows, wc = conv.shape
    w_groups = wc // cout
    inv_cnt = 1.0 / (m_rows * w_groups)          # 1 / (N*H*W)

    def _chan_reduce(v):
        # v: (1, WC) per-lane totals (lane = w*Cout + co).  Circular lane rolls
        # with stride Cout (doubling) sum the W groups of each channel; every
        # lane ends up holding its channel's total (XLU work, exact f32).
        shift = cout
        while shift < wc:
            v = v + pltpu.roll(v, shift, axis=1)
            shift *= 2
        return v

    # Centered (two-pass) batch statistics, computed on the in-VMEM activation.
    mean = _chan_reduce(jnp.sum(conv, axis=0, keepdims=True)) * inv_cnt
    d = conv - mean
    var = _chan_reduce(jnp.sum(d * d, axis=0, keepdims=True)) * inv_cnt

    scale = gamma_ref[...] * lax.rsqrt(var + eps)        # EUP rsqrt
    y = d * scale + beta_ref[...]
    out_ref[...] = jnp.where(y > 0, y, 0.01 * y).astype(out_ref.dtype)


def prepare_toeplitz_weight(w_pt, width):
    """Block-Toeplitz conv weight, (3*Wp*Cin, W*Cout) bf16.

    Pure function of the conv weights -- in a real model call it once per weight
    update and reuse the result across forward calls (hoisted per perf review).

    M[ky*Wp*Cin + wi*Cin + ci, x*Cout + co] = w_pt[co, ci, ky, wi-x]  (0<=wi-x<3)
    """
    cout, cin = w_pt.shape[0], w_pt.shape[1]
    assert w_pt.shape[2:] == (3, 3), "kernel is specialized for 3x3 'same' conv"
    wp = width + 2
    wk = jnp.transpose(w_pt, (2, 3, 1, 0)).astype(jnp.float32)      # (3,3,Cin,Cout)
    wi = jnp.arange(wp)[:, None]
    wo = jnp.arange(width)[None, :]
    kx = wi - wo                                                    # (Wp, W)
    valid = (kx >= 0) & (kx < 3)
    t = wk[:, jnp.clip(kx, 0, 2)] * valid[None, :, :, None, None]   # (3,Wp,W,Cin,Cout)
    m = jnp.transpose(t, (0, 1, 3, 2, 4)).reshape(3 * wp * cin, width * cout)
    return m.astype(jnp.bfloat16)


def basic_convolution(x_nchw, w_pt, b, gamma, beta, *, eps=1e-5, toeplitz=None):
    """x_nchw: [N, Cin, H, W]; w_pt: [Cout, Cin, 3, 3] (PyTorch layout).

    `b` (the Conv2d bias) is accepted for interface parity but unused:
    training-mode BatchNorm's mean subtraction cancels a per-channel constant
    bias exactly, so it does not affect the forward output.
    """
    del b
    N, Cin, H, W = x_nchw.shape
    Cout = w_pt.shape[0]
    assert w_pt.shape[2:] == (3, 3), "kernel is specialized for 3x3 'same' conv"
    assert W & (W - 1) == 0, "in-kernel lane roll-reduce assumes W is a power of 2"
    Hp, Wp = H + 2, W + 2
    WC = W * Cout                       # lane dim (128 here -> full-width stores)
    K = 3 * Wp * Cin                    # fused contraction dim (216 here)
    M = N * H                           # MXU rows: all images in one step

    # --- input prep: NHWC, 'same' zero pad, and lane-concat of the 3 ky slabs ---
    # (small fused XLA ops; kernel then needs no in-kernel slicing or casting)
    x_nhwc = jnp.transpose(x_nchw, (0, 2, 3, 1))
    xp = jnp.pad(x_nhwc, ((0, 0), (1, 1), (1, 1), (0, 0)))
    rows = xp.reshape(N, Hp, Wp * Cin)
    lhs = jnp.concatenate(
        [rows[:, 0:H], rows[:, 1:H + 1], rows[:, 2:H + 2]], axis=-1)
    lhs = lhs.reshape(M, K).astype(jnp.bfloat16)

    # --- weights: precomputed (hoisted) block-Toeplitz matrix if provided ---
    m = toeplitz if toeplitz is not None else prepare_toeplitz_weight(w_pt, W)

    # --- BN affine params laid out on the output lanes (lane = w*Cout + co) ---
    gamma_l = jnp.tile(gamma.astype(jnp.float32), W).reshape(1, WC)
    beta_l = jnp.tile(beta.astype(jnp.float32), W).reshape(1, WC)

    kernel = functools.partial(_fused_conv_bn_act_kernel,
                               cout=Cout, eps=float(eps))

    out = pl.pallas_call(
        kernel,
        grid=(1,),
        in_specs=[pl.BlockSpec((M, K), lambda i: (0, 0)),
                  pl.BlockSpec((K, WC), lambda i: (0, 0)),
                  pl.BlockSpec((1, WC), lambda i: (0, 0)),
                  pl.BlockSpec((1, WC), lambda i: (0, 0))],
        out_specs=pl.BlockSpec((M, WC), lambda i: (0, 0)),
        out_shape=jax.ShapeDtypeStruct((M, WC), jnp.float32),
        compiler_params=pltpu.CompilerParams(
            dimension_semantics=("arbitrary",)),
    )(lhs, m, gamma_l, beta_l)

    # (N*H, W*Cout) == flat NHWC -> NCHW (kept for PyTorch interface parity)
    return jnp.transpose(out.reshape(N, H, W, Cout), (0, 3, 1, 2))


def _reference(x_nchw, w_pt, b, gamma, beta):
    """Pure-JAX f32 reference mirroring Conv2d + BatchNorm2d(train) + LeakyReLU."""
    conv = lax.conv_general_dilated(
        x_nchw.astype(jnp.float32), w_pt.astype(jnp.float32),
        window_strides=(1, 1), padding="SAME",
        dimension_numbers=("NCHW", "OIHW", "NCHW"))
    conv = conv + b.reshape(1, -1, 1, 1)
    mean = jnp.mean(conv, axis=(0, 2, 3), keepdims=True)
    var = jnp.mean((conv - mean) ** 2, axis=(0, 2, 3), keepdims=True)
    y = gamma.reshape(1, -1, 1, 1) * (conv - mean) * lax.rsqrt(var + 1e-5) \
        + beta.reshape(1, -1, 1, 1)
    return jnp.where(y > 0, y, 0.01 * y)


if __name__ == "__main__":
    key = jax.random.PRNGKey(0)
    k_x, k_w, k_b, k_g, k_be = jax.random.split(key, 5)

    N, Cin, Cout, H, W = 2, 4, 8, 16, 16
    x = jax.random.normal(k_x, (N, Cin, H, W), dtype=jnp.float32)

    # Deterministic synthetic parameters (shapes match nn.Conv2d / nn.BatchNorm2d)
    fan_in = Cin * 3 * 3
    w = jax.random.normal(k_w, (Cout, Cin, 3, 3), dtype=jnp.float32) / jnp.sqrt(fan_in)
    b = jax.random.normal(k_b, (Cout,), dtype=jnp.float32) * 0.1
    gamma = 1.0 + 0.1 * jax.random.normal(k_g, (Cout,), dtype=jnp.float32)
    beta = 0.1 * jax.random.normal(k_be, (Cout,), dtype=jnp.float32)

    # Hoisted weight re-layout: computed once per weight update, reused per call.
    m = prepare_toeplitz_weight(w, W)
    fwd = jax.jit(lambda xx: basic_convolution(xx, w, b, gamma, beta, toeplitz=m))

    out = jax.block_until_ready(fwd(x))

    ref = _reference(x, w, b, gamma, beta)
    assert out.shape == (N, Cout, H, W)
    # bf16 MXU inputs in the kernel vs. a pure-f32 reference -> loosened tolerance.
    err = float(jnp.max(jnp.abs(out - ref)))
    assert jnp.allclose(out, ref, atol=3e-2, rtol=3e-2), f"max abs err {err}"

    print("KERNEL_OK")
</pallas_src>

<mosaic_0001>
module attributes {stable_mosaic.version = 11 : i64} {
  func.func @_fused_conv_bn_act_kernel(%arg0: i32, %arg1: memref<32x216xbf16, #tpu.memory_space<vmem>>, %arg2: memref<216x128xbf16, #tpu.memory_space<vmem>>, %arg3: memref<1x128xf32, #tpu.memory_space<vmem>>, %arg4: memref<1x128xf32, #tpu.memory_space<vmem>>, %arg5: memref<32x128xf32, #tpu.memory_space<vmem>>) attributes {dimension_semantics = [#tpu.dimension_semantics<arbitrary>], iteration_bounds = array<i64: 1>, scalar_prefetch = 0 : i64, scratch_operands = 0 : i64, tpu.core_type = #tpu.core_type<tc>, window_params = [{pipeline_mode = #tpu.pipeline_mode<synchronous>, transform_indices = @transform_0, window_bounds = array<i64: 32, 216>}, {pipeline_mode = #tpu.pipeline_mode<synchronous>, transform_indices = @transform_1, window_bounds = array<i64: 216, 128>}, {pipeline_mode = #tpu.pipeline_mode<synchronous>, transform_indices = @transform_2, window_bounds = array<i64: 1, 128>}, {pipeline_mode = #tpu.pipeline_mode<synchronous>, transform_indices = @transform_3, window_bounds = array<i64: 1, 128>}, {pipeline_mode = #tpu.pipeline_mode<synchronous>, transform_indices = @transform_4, window_bounds = array<i64: 32, 128>}]} {
    %c0 = arith.constant 0 : index
    %c0_0 = arith.constant 0 : index
    %0 = vector.load %arg1[%c0, %c0_0] : memref<32x216xbf16, #tpu.memory_space<vmem>>, vector<32x216xbf16>
    %c0_1 = arith.constant 0 : index
    %c0_2 = arith.constant 0 : index
    %1 = vector.load %arg2[%c0_1, %c0_2] : memref<216x128xbf16, #tpu.memory_space<vmem>>, vector<216x128xbf16>
    %cst = arith.constant dense<0.000000e+00> : vector<32x128xf32>
    %2 = tpu.matmul %0, %1, %cst {dimension_numbers = #tpu.dot_dimension_numbers<[1], [0], [0], [1], [0, 0, 1, 1], [], []>} : vector<32x216xbf16>, vector<216x128xbf16>, vector<32x128xf32> -> vector<32x128xf32>
    %cst_3 = arith.constant dense<0.000000e+00> : vector<128xf32>
    %3 = vector.multi_reduction <add>, %2, %cst_3 [0] : vector<32x128xf32> to vector<128xf32>
    %4 = vector.shape_cast %3 : vector<128xf32> to vector<1x128xf32>
    %c8_i32 = arith.constant 8 : i32
    %5 = tpu.dynamic_rotate %4 by %c8_i32 dim 1 : vector<1x128xf32>, i32 -> vector<1x128xf32>
    %6 = arith.addf %4, %5 : vector<1x128xf32>
    %c16_i32 = arith.constant 16 : i32
    %7 = tpu.dynamic_rotate %6 by %c16_i32 dim 1 : vector<1x128xf32>, i32 -> vector<1x128xf32>
    %8 = arith.addf %6, %7 : vector<1x128xf32>
    %c32_i32 = arith.constant 32 : i32
    %9 = tpu.dynamic_rotate %8 by %c32_i32 dim 1 : vector<1x128xf32>, i32 -> vector<1x128xf32>
    %10 = arith.addf %8, %9 : vector<1x128xf32>
    %c64_i32 = arith.constant 64 : i32
    %11 = tpu.dynamic_rotate %10 by %c64_i32 dim 1 : vector<1x128xf32>, i32 -> vector<1x128xf32>
    %12 = arith.addf %10, %11 : vector<1x128xf32>
    %cst_4 = arith.constant 0.001953125 : f32
    %13 = vector.broadcast %cst_4 : f32 to vector<1x128xf32>
    %14 = arith.mulf %12, %13 : vector<1x128xf32>
    %15 = vector.broadcast %14 : vector<1x128xf32> to vector<32x128xf32>
    %16 = arith.subf %2, %15 : vector<32x128xf32>
    %17 = arith.mulf %16, %16 : vector<32x128xf32>
    %cst_5 = arith.constant dense<0.000000e+00> : vector<128xf32>
    %18 = vector.multi_reduction <add>, %17, %cst_5 [0] : vector<32x128xf32> to vector<128xf32>
    %19 = vector.shape_cast %18 : vector<128xf32> to vector<1x128xf32>
    %c8_i32_6 = arith.constant 8 : i32
    %20 = tpu.dynamic_rotate %19 by %c8_i32_6 dim 1 : vector<1x128xf32>, i32 -> vector<1x128xf32>
    %21 = arith.addf %19, %20 : vector<1x128xf32>
    %c16_i32_7 = arith.constant 16 : i32
    %22 = tpu.dynamic_rotate %21 by %c16_i32_7 dim 1 : vector<1x128xf32>, i32 -> vector<1x128xf32>
    %23 = arith.addf %21, %22 : vector<1x128xf32>
    %c32_i32_8 = arith.constant 32 : i32
    %24 = tpu.dynamic_rotate %23 by %c32_i32_8 dim 1 : vector<1x128xf32>, i32 -> vector<1x128xf32>
    %25 = arith.addf %23, %24 : vector<1x128xf32>
    %c64_i32_9 = arith.constant 64 : i32
    %26 = tpu.dynamic_rotate %25 by %c64_i32_9 dim 1 : vector<1x128xf32>, i32 -> vector<1x128xf32>
    %27 = arith.addf %25, %26 : vector<1x128xf32>
    %cst_10 = arith.constant 0.001953125 : f32
    %28 = vector.broadcast %cst_10 : f32 to vector<1x128xf32>
    %29 = arith.mulf %27, %28 : vector<1x128xf32>
    %c0_11 = arith.constant 0 : index
    %c0_12 = arith.constant 0 : index
    %30 = vector.load %arg3[%c0_11, %c0_12] : memref<1x128xf32, #tpu.memory_space<vmem>>, vector<1x128xf32>
    %cst_13 = arith.constant 9.99999974E-6 : f32
    %31 = vector.broadcast %cst_13 : f32 to vector<1x128xf32>
    %32 = arith.addf %29, %31 : vector<1x128xf32>
    %33 = math.rsqrt %32 : vector<1x128xf32>
    %34 = arith.mulf %30, %33 : vector<1x128xf32>
    %35 = vector.broadcast %34 : vector<1x128xf32> to vector<32x128xf32>
    %36 = arith.mulf %16, %35 : vector<32x128xf32>
    %c0_14 = arith.constant 0 : index
    %c0_15 = arith.constant 0 : index
    %37 = vector.load %arg4[%c0_14, %c0_15] : memref<1x128xf32, #tpu.memory_space<vmem>>, vector<1x128xf32>
    %38 = vector.broadcast %37 : vector<1x128xf32> to vector<32x128xf32>
    %39 = arith.addf %36, %38 : vector<32x128xf32>
    %cst_16 = arith.constant 0.000000e+00 : f32
    %40 = vector.broadcast %cst_16 : f32 to vector<32x128xf32>
    %41 = arith.cmpf ogt, %39, %40 : vector<32x128xf32>
    %cst_17 = arith.constant 0.00999999977 : f32
    %42 = vector.broadcast %cst_17 : f32 to vector<32x128xf32>
    %43 = arith.mulf %42, %39 : vector<32x128xf32>
    %44 = arith.select %41, %39, %43 : vector<32x128xi1>, vector<32x128xf32>
    %c0_18 = arith.constant 0 : index
    %c0_19 = arith.constant 0 : index
    %45 = vector.load %arg5[%c0_18, %c0_19] : memref<32x128xf32, #tpu.memory_space<vmem>>, vector<32x128xf32>
    tpu.vector_store %arg5[%c0_18, %c0_19], %44 {strides = array<i32>} : memref<32x128xf32, #tpu.memory_space<vmem>>, vector<32x128xf32>,
    return
  }
  func.func @transform_0(%arg0: i32) -> (i32, i32) {
    %c0_i32 = arith.constant 0 : i32
    %c0_i32_0 = arith.constant 0 : i32
    %c0_i32_1 = arith.constant 0 : i32
    return %c0_i32, %c0_i32_0 : i32, i32
  }
  func.func @transform_1(%arg0: i32) -> (i32, i32) {
    %c0_i32 = arith.constant 0 : i32
    %c0_i32_0 = arith.constant 0 : i32
    %c0_i32_1 = arith.constant 0 : i32
    return %c0_i32, %c0_i32_0 : i32, i32
  }
  func.func @transform_2(%arg0: i32) -> (i32, i32) {
    %c0_i32 = arith.constant 0 : i32
    %c0_i32_0 = arith.constant 0 : i32
    %c0_i32_1 = arith.constant 0 : i32
    return %c0_i32, %c0_i32_0 : i32, i32
  }
  func.func @transform_3(%arg0: i32) -> (i32, i32) {
    %c0_i32 = arith.constant 0 : i32
    %c0_i32_0 = arith.constant 0 : i32
    %c0_i32_1 = arith.constant 0 : i32
    return %c0_i32, %c0_i32_0 : i32, i32
  }
  func.func @transform_4(%arg0: i32) -> (i32, i32) {
    %c0_i32 = arith.constant 0 : i32
    %c0_i32_0 = arith.constant 0 : i32
    %c0_i32_1 = arith.constant 0 : i32
    return %c0_i32, %c0_i32_0 : i32, i32
  }
}

</mosaic_0001>

<llo_original>
// kernel: tile.10
$region0: #{tile.10}
  #allocation0 [shape = 's32[1]{0}', space=sflag, size = 0x4, scoped, tag = 'scoped memory for tile.10']
  %s0 = inlined_call_operand.vmem [shape: f32[8], index: 0, kind: input, shape index: {}]
  %s1 = inlined_call_operand.vmem [shape: f32[16,8], index: 1, kind: output, shape index: {}]
  // Predicated region
  $region2: #{tile.10} parent=0 // pred_check
    _
  $region3: #{tile.10} parent=0 // pred_check_branch
    %3 = sbr.rel (0) target = $region5
  $region4: #{tile.10} parent=0 // pred_region
    _
  $region5: #{tile.10} parent=0 // pred_fallthru
    _
  %v4 = vld [vmem:[%s0] ss:$0 sm:$0xff]
  %5 = vst [vmem:[%s1] sm:$0xff] %v4
  %s6 = scalar_lea.vmem %s1, 8
  %7 = vst [vmem:[%s6] sm:$0xff] %v4

// kernel: tile.11
$region0: #{tile.11}
  %s0 = inlined_call_operand.vmem [shape: f32[16,8], index: 0, kind: input, shape index: {}]
  %s1 = inlined_call_operand.vmem [shape: f32[1,128], index: 1, kind: output, shape index: {}]
  $region1: #{tile.11} parent=0
    #allocation0 [shape = 'u8[4096]{0}', space=vmem, size = 0x1000, scoped, tag = 'scoped mem for output reshape']
    %v2 = vld [vmem:[%s0] sm:$0x1]
    %vm3 = vcmask 64512
    %4 = vst.msk [vmem:[#allocation0] sm:$0x1] %vm3, %v2
    %s5 = scalar_lea.vmem %s0, 15
    %v6 = vld [vmem:[%s5] sm:$0x1]
    %7 = vrot.lane.b32.xlu0 %v6, 120
    %v8 = vpop.permute.xlu0 %7
    %vm9 = vcmask 1048512
    %10 = vst.msk [vmem:[#allocation0] sm:$0x1] %vm9, %v8
    %s11 = scalar_lea.vmem %s0, 14
    %v12 = vld [vmem:[%s11] sm:$0x1]
    %13 = vrot.lane.b32.xlu0 %v12, 112
    %v14 = vpop.permute.xlu0 %13
    %vm15 = vcmask 982912
    %16 = vst.msk [vmem:[#allocation0] sm:$0x1] %vm15, %v14
    %s17 = scalar_lea.vmem %s0, 13
    %v18 = vld [vmem:[%s17] sm:$0x1]
    %19 = vrot.lane.b32.xlu0 %v18, 104
    %v20 = vpop.permute.xlu0 %19
    %vm21 = vcmask 917312
    %22 = vst.msk [vmem:[#allocation0] sm:$0x1] %vm21, %v20
    %s23 = scalar_lea.vmem %s0, 12
    %v24 = vld [vmem:[%s23] sm:$0x1]
    %25 = vrot.lane.b32.xlu0 %v24, 96
    %v26 = vpop.permute.xlu0 %25
    %vm27 = vcmask 851712
    %28 = vst.msk [vmem:[#allocation0] sm:$0x1] %vm27, %v26
    %s29 = scalar_lea.vmem %s0, 11
    %v30 = vld [vmem:[%s29] sm:$0x1]
    %31 = vrot.lane.b32.xlu0 %v30, 88
    %v32 = vpop.permute.xlu0 %31
    %vm33 = vcmask 786112
    %34 = vst.msk [vmem:[#allocation0] sm:$0x1] %vm33, %v32
    %s35 = scalar_lea.vmem %s0, 10
    %v36 = vld [vmem:[%s35] sm:$0x1]
    %37 = vrot.lane.b32.xlu0 %v36, 80
    %v38 = vpop.permute.xlu0 %37
    %vm39 = vcmask 720512
    %40 = vst.msk [vmem:[#allocation0] sm:$0x1] %vm39, %v38
    %s41 = scalar_lea.vmem %s0, 9
    %v42 = vld [vmem:[%s41] sm:$0x1]
    %43 = vrot.lane.b32.xlu0 %v42, 72
    %v44 = vpop.permute.xlu0 %43
    %vm45 = vcmask 654912
    %46 = vst.msk [vmem:[#allocation0] sm:$0x1] %vm45, %v44
    %s47 = scalar_lea.vmem %s0, 8
    %v48 = vld [vmem:[%s47] sm:$0x1]
    %49 = vrot.lane.b32.xlu0 %v48, 64
    %v50 = vpop.permute.xlu0 %49
    %vm51 = vcmask 589312
    %52 = vst.msk [vmem:[#allocation0] sm:$0x1] %vm51, %v50
    %s53 = scalar_lea.vmem %s0, 7
    %v54 = vld [vmem:[%s53] sm:$0x1]
    %55 = vrot.lane.b32.xlu0 %v54, 56
    %v56 = vpop.permute.xlu0 %55
    %vm57 = vcmask 523712
    %58 = vst.msk [vmem:[#allocation0] sm:$0x1] %vm57, %v56
    %s59 = scalar_lea.vmem %s0, 6
    %v60 = vld [vmem:[%s59] sm:$0x1]
    %61 = vrot.lane.b32.xlu0 %v60, 48
    %v62 = vpop.permute.xlu0 %61
    %vm63 = vcmask 458112
    %64 = vst.msk [vmem:[#allocation0] sm:$0x1] %vm63, %v62
    %s65 = scalar_lea.vmem %s0, 5
    %v66 = vld [vmem:[%s65] sm:$0x1]
    %67 = vrot.lane.b32.xlu0 %v66, 40
    %v68 = vpop.permute.xlu0 %67
    %vm69 = vcmask 392512
    %70 = vst.msk [vmem:[#allocation0] sm:$0x1] %vm69, %v68
    %s71 = scalar_lea.vmem %s0, 4
    %v72 = vld [vmem:[%s71] sm:$0x1]
    %73 = vrot.lane.b32.xlu0 %v72, 32
    %v74 = vpop.permute.xlu0 %73
    %vm75 = vcmask 326912
    %76 = vst.msk [vmem:[#allocation0] sm:$0x1] %vm75, %v74
    %s77 = scalar_lea.vmem %s0, 3
    %v78 = vld [vmem:[%s77] sm:$0x1]
    %79 = vrot.lane.b32.xlu0 %v78, 24
    %v80 = vpop.permute.xlu0 %79
    %vm81 = vcmask 261312
    %82 = vst.msk [vmem:[#allocation0] sm:$0x1] %vm81, %v80
    %s83 = scalar_lea.vmem %s0, 2
    %v84 = vld [vmem:[%s83] sm:$0x1]
    %85 = vrot.lane.b32.xlu0 %v84, 16
    %v86 = vpop.permute.xlu0 %85
    %vm87 = vcmask 195712
    %88 = vst.msk [vmem:[#allocation0] sm:$0x1] %vm87, %v86
    %s89 = scalar_lea.vmem %s0, 1
    %v90 = vld [vmem:[%s89] sm:$0x1]
    %91 = vrot.lane.b32.xlu0 %v90, 8
    %v92 = vpop.permute.xlu0 %91
    %vm93 = vcmask 130112
    %94 = vst.msk [vmem:[#allocation0] sm:$0x1] %vm93, %v92
    %s96 = sshllo.u32 0, 1
    %v98 = vld [vmem:[#allocation0] sm:%s96]
    %s99 = sshllo.u32 0, 1
    %100 = vst [vmem:[%s1] sm:%s99] %v98

// kernel: _lambda_.1
$region0: #{_lambda_.1}
  #allocation0 [shape = 'u32[]', space=smem, size = 0x4, offset = 0x4, fixed_abs, tag = 'smem constant byte address 0x4 - core index']
  #allocation1 [shape = 'u32[144,128]{1,0:T(1,128)}', space=vmem, size = 0x12000, scoped, tag = 'internal scratch']
  %s0 = inlined_call_operand.vmem [shape: bf16[32,216], index: 0, kind: input, shape index: {}]
  %s1 = inlined_call_operand.vmem [shape: bf16[216,128], index: 1, kind: input, shape index: {}]
  %s2 = inlined_call_operand.vmem [shape: f32[1,128], index: 2, kind: input, shape index: {}]
  %s3 = inlined_call_operand.vmem [shape: f32[1,128], index: 3, kind: input, shape index: {}]
  %s4 = inlined_call_operand.vmem [shape: f32[32,128], index: 4, kind: output, shape index: {}]
  %s5 = sld [smem:[#allocation0]]
  $region26: #{_lambda_.1} parent=0
    _
  %s7 = ssub.s32 1, %s5
  %s8 = scalar_select 0, %s7, %s5
  // Predicated region
  $region2: #{_lambda_.1} parent=0 // pred_check
    _
  $region3: #{_lambda_.1} parent=0 // pred_check_branch
    %10 = sbr.rel (0) target = $region5
  $region4: #{_lambda_.1} parent=0 // pred_region
    _
  $region5: #{_lambda_.1} parent=0 // pred_fallthru
    _
  // Predicated region
  $region6: #{_lambda_.1} parent=0 // pred_check
    _
  $region7: #{_lambda_.1} parent=0 // pred_check_branch
    %12 = sbr.rel (0) target = $region9
  $region8: #{_lambda_.1} parent=0 // pred_region
    _
  $region9: #{_lambda_.1} parent=0 // pred_fallthru
    _
  // Predicated region
  $region10: #{_lambda_.1} parent=0 // pred_check
    _
  $region11: #{_lambda_.1} parent=0 // pred_check_branch
    %14 = sbr.rel (0) target = $region13
  $region12: #{_lambda_.1} parent=0 // pred_region
    _
  $region13: #{_lambda_.1} parent=0 // pred_fallthru
    _
  // Predicated region
  $region14: #{_lambda_.1} parent=0 // pred_check
    _
  $region15: #{_lambda_.1} parent=0 // pred_check_branch
    %16 = sbr.rel (0) target = $region17
  $region16: #{_lambda_.1} parent=0 // pred_region
    _
  $region17: #{_lambda_.1} parent=0 // pred_fallthru
    _
  %v18 = vld [vmem:[%s0] sm:$0xff]
  %v19 = vld [vmem:[%s0 + $0x8] sm:$0xff]
  %v20 = vld [vmem:[%s0 + $0x10] sm:$0xff]
  %v21 = vld [vmem:[%s0 + $0x18] sm:$0xff]
  %v22 = vld [vmem:[%s1] sm:$0xf]
  %v23 = vld [vmem:[%s1 + $0x4] sm:$0xf]
  %v24 = vld [vmem:[%s1 + $0x8] sm:$0xf]
  %v25 = vld [vmem:[%s1 + $0xc] sm:$0xf]
  %v26 = vld [vmem:[%s1 + $0x10] sm:$0xf]
  %v27 = vld [vmem:[%s1 + $0x14] sm:$0xf]
  %v28 = vld [vmem:[%s1 + $0x18] sm:$0xf]
  %v29 = vld [vmem:[%s1 + $0x1c] sm:$0xf]
  %v30 = vld [vmem:[%s1 + $0x20] sm:$0xf]
  %v31 = vld [vmem:[%s1 + $0x24] sm:$0xf]
  %v32 = vld [vmem:[%s1 + $0x28] sm:$0xf]
  %v33 = vld [vmem:[%s1 + $0x2c] sm:$0xf]
  %v34 = vld [vmem:[%s1 + $0x30] sm:$0xf]
  %v35 = vld [vmem:[%s1 + $0x34] sm:$0xf]
  %v36 = vld [vmem:[%s1 + $0x38] sm:$0xf]
  %v37 = vld [vmem:[%s1 + $0x3c] sm:$0xf]
  %v38 = vld [vmem:[%s1 + $0x40] sm:$0xf]
  %v39 = vld [vmem:[%s1 + $0x44] sm:$0xf]
  %v40 = vld [vmem:[%s1 + $0x48] sm:$0xf]
  %v41 = vld [vmem:[%s1 + $0x4c] sm:$0xf]
  %v42 = vld [vmem:[%s1 + $0x50] sm:$0xf]
  %v43 = vld [vmem:[%s1 + $0x54] sm:$0xf]
  %v44 = vld [vmem:[%s1 + $0x58] sm:$0xf]
  %v45 = vld [vmem:[%s1 + $0x5c] sm:$0xf]
  %v46 = vld [vmem:[%s1 + $0x60] sm:$0xf]
  %v47 = vld [vmem:[%s1 + $0x64] sm:$0xf]
  %v48 = vld [vmem:[%s1 + $0x68] sm:$0xf]
  %v53 = vunpack.c.l.b16 %v18
  %v54 = vunpack.c.h.b16 %v18
  %v55 = vunpack.c.l.b16 %v19
  %v56 = vunpack.c.h.b16 %v19
  %v57 = vunpack.c.l.b16 %v20
  %v58 = vunpack.c.h.b16 %v20
  %v59 = vunpack.c.l.b16 %v21
  %v60 = vunpack.c.h.b16 %v21
  %v61 = vpack.c.b16 %v55, %v53
  %v62 = vpack.c.b16 %v56, %v54
  %v63 = vpack.c.b16 %v59, %v57
  %v64 = vpack.c.b16 %v60, %v58
  %v94 = vunpack.c.l.b16 %v22
  %v95 = vunpack.c.l.b16 %v23
  %v96 = vunpack.c.l.b16 %v24
  %v97 = vunpack.c.l.b16 %v25
  %v98 = vunpack.c.l.b16 %v26
  %v99 = vunpack.c.l.b16 %v27
  %v100 = vunpack.c.l.b16 %v28
  %v101 = vunpack.c.l.b16 %v29
  %v102 = vunpack.c.l.b16 %v30
  %v103 = vunpack.c.l.b16 %v31
  %v104 = vunpack.c.l.b16 %v32
  %v105 = vunpack.c.l.b16 %v33
  %v106 = vunpack.c.l.b16 %v34
  %v107 = vunpack.c.l.b16 %v35
  %v108 = vunpack.c.l.b16 %v36
  %v109 = vunpack.c.l.b16 %v37
  %v110 = vunpack.c.l.b16 %v38
  %v111 = vunpack.c.l.b16 %v39
  %v112 = vunpack.c.l.b16 %v40
  %v113 = vunpack.c.l.b16 %v41
  %v114 = vunpack.c.l.b16 %v42
  %v115 = vunpack.c.l.b16 %v43
  %v116 = vunpack.c.l.b16 %v44
  %v117 = vunpack.c.l.b16 %v45
  %v118 = vunpack.c.l.b16 %v46
  %v119 = vunpack.c.l.b16 %v47
  %v120 = vunpack.c.l.b16 %v48
  %v121 = vpack.c.b16 %v95, %v94
  %v122 = vpack.c.b16 %v97, %v96
  %v123 = vpack.c.b16 %v99, %v98
  %v124 = vpack.c.b16 %v101, %v100
  %v125 = vpack.c.b16 %v103, %v102
  %v126 = vpack.c.b16 %v105, %v104
  %v127 = vpack.c.b16 %v107, %v106
  %v128 = vpack.c.b16 %v109, %v108
  %v129 = vpack.c.b16 %v111, %v110
  %v130 = vpack.c.b16 %v113, %v112
  %v131 = vpack.c.b16 %v115, %v114
  %v132 = vpack.c.b16 %v117, %v116
  %v133 = vpack.c.b16 %v119, %v118
  %v134 = vpack.c.b16 %v120, %v120
  %vm148 = vcmask 719872
  %v150 = vsel %vm148, %v62, 0
  %v153 = vsel %vm148, %v64, 0
  %vm155 = vcmask 1043456
  %v157 = vsel %vm155, %v134, 0
  %159 = vmatprep.subr.bf16.mxu0 0
  %160 = vmatpush1.bf16.msra.mxu0 %v121
  %161 = vmatprep.subr.bf16.mxu0 0
  %162 = vmatpush1.bf16.msra.mxu0 %v122
  %163 = vmatprep.subr.bf16.mxu0 0
  %164 = vmatpush1.bf16.msra.mxu0 %v123
  %165 = vmatprep.subr.bf16.mxu0 0
  %166 = vmatpush1.bf16.msra.mxu0 %v124
  %167 = vmatprep.subr.bf16.mxu0 0
  %168 = vmatpush1.bf16.msra.mxu0 %v125
  %169 = vmatprep.subr.bf16.mxu0 0
  %170 = vmatpush1.bf16.msra.mxu0 %v126
  %171 = vmatprep.subr.bf16.mxu0 0
  %172 = vmatpush1.bf16.msra.mxu0 %v127
  %173 = vmatprep.subr.bf16.mxu0 0
  %174 = vmatpush1.bf16.msra.mxu0 %v128
  %175 = vmatprep.subr.bf16.mxu0 0
  %176 = vmatpush1.bf16.msra.mxu0 %v129
  %177 = vmatprep.subr.bf16.mxu0 0
  %178 = vmatpush1.bf16.msra.mxu0 %v130
  %179 = vmatprep.subr.bf16.mxu0 0
  %180 = vmatpush1.bf16.msra.mxu0 %v131
  %181 = vmatprep.subr.bf16.mxu0 0
  %182 = vmatpush1.bf16.msra.mxu0 %v132
  %183 = vmatprep.subr.bf16.mxu0 0
  %184 = vmatpush1.bf16.msra.mxu0 %v133
  %185 = vmatprep.subr.bf16.mxu0 0
  %186 = vmatpush1.bf16.msra.mxu0 %v157
  %187 = vmatprep.subr.bf16.mxu0 0
  %188 = vmatpush1.bf16.msra.mxu0 0
  %189 = vmatprep.subr.bf16.mxu0 0
  %190 = vmatpush1.bf16.msra.mxu0 0
  %191 = vmatprep.mubr.bf16.mxu0 %v150
  %192 = vmatmul.mubr.bf16.gmra.mrb[0].mxu0 %v61
  %v193 = vpop.f32.mrb[0].mxu0
  %v194 = vadd.f32 0.0, %v193
  %v195 = vpop.f32.mrb[0].mxu0
  %v196 = vpop.f32.mrb[0].mxu0
  %v197 = vadd.f32 0.0, %v196
  %v198 = vpop.f32.mrb[0].mxu0
  %199 = vmatprep.mubr.bf16.mxu0 %v153
  %200 = vmatmul.mubr.bf16.gmra.mrb[0].mxu0 %v63
  %v201 = vpop.f32.mrb[0].mxu0
  %v202 = vadd.f32 0.0, %v201
  %v203 = vpop.f32.mrb[0].mxu0
  %v204 = vpop.f32.mrb[0].mxu0
  %v205 = vadd.f32 0.0, %v204
  %v206 = vpop.f32.mrb[0].mxu0
  %207 = vdwg.mxu0
  %v208 = vadd.f32 %v194, %v197
  %v209 = vadd.f32 %v208, %v202
  %v210 = vadd.f32 %v209, %v205
  %v211 = vrot.slane %v210, 4
  %v212 = vadd.f32 %v210, %v211
  %v213 = vrot.slane %v212, 2
  %v214 = vadd.f32 %v212, %v213
  %v215 = vrot.slane %v214, 1
  %v216 = vadd.f32 %v214, %v215
  %217 = vrot.lane.b32.xlu0 %v216, 8
  %v218 = vpop.permute.xlu0 %217
  %v219 = vadd.f32 %v216, %v218
  %220 = vrot.lane.b32.xlu0 %v219, 16
  %v221 = vpop.permute.xlu0 %220
  %v222 = vadd.f32 %v219, %v221
  %223 = vrot.lane.b32.xlu0 %v222, 32
  %v224 = vpop.permute.xlu0 %223
  %v225 = vadd.f32 %v222, %v224
  %226 = vrot.lane.b32.xlu0 %v225, 64
  %v227 = vpop.permute.xlu0 %226
  %v228 = vadd.f32 %v225, %v227
  %v229 = vmul.f32 %v228, 0.001953125
  %v230 = vlaneseq
  %v231 = vshrl.u32 %v230, 7
  %v232 = vsub.s32 0, %v231
  %v233 = vrot.slane %v229, %v232
  %v234 = vsub.f32 %v194, %v233
  %v235 = vsub.f32 %v197, %v233
  %v236 = vsub.f32 %v202, %v233
  %v237 = vsub.f32 %v205, %v233
  %v238 = vmul.f32 %v234, %v234
  %v239 = vmul.f32 %v235, %v235
  %v240 = vmul.f32 %v236, %v236
  %v241 = vmul.f32 %v237, %v237
  %v242 = vadd.f32 %v238, %v239
  %v243 = vadd.f32 %v242, %v240
  %v244 = vadd.f32 %v243, %v241
  %v245 = vrot.slane %v244, 4
  %v246 = vadd.f32 %v244, %v245
  %v247 = vrot.slane %v246, 2
  %v248 = vadd.f32 %v246, %v247
  %v249 = vrot.slane %v248, 1
  %v250 = vadd.f32 %v248, %v249
  %251 = vrot.lane.b32.xlu0 %v250, 8
  %v252 = vpop.permute.xlu0 %251
  %v253 = vadd.f32 %v250, %v252
  %254 = vrot.lane.b32.xlu0 %v253, 16
  %v255 = vpop.permute.xlu0 %254
  %v256 = vadd.f32 %v253, %v255
  %257 = vrot.lane.b32.xlu0 %v256, 32
  %v258 = vpop.permute.xlu0 %257
  %v259 = vadd.f32 %v256, %v258
  %260 = vrot.lane.b32.xlu0 %v259, 64
  %v261 = vpop.permute.xlu0 %260
  %v262 = vadd.f32 %v259, %v261
  %v263 = vmul.f32 %v262, 0.001953125
  %v264 = vld [vmem:[%s2] sm:$0x1]
  %v265 = vadd.f32 %v263, 1e-05
  %v266 = vrsqrt.pop %v265
  %v267 = vmul.f32 %v264, %v266
  %v269 = vlaneseq
  %v270 = vshrl.u32 %v269, 7
  %v271 = vsub.s32 0, %v270
  %v272 = vrot.slane %v267, %v271
  %v274 = vmul.f32 %v234, %v272
  %v275 = vmul.f32 %v235, %v272
  %v276 = vmul.f32 %v236, %v272
  %v277 = vmul.f32 %v237, %v272
  %v278 = vld [vmem:[%s3] sm:$0x1]
  %v280 = vlaneseq
  %v281 = vshrl.u32 %v280, 7
  %v282 = vsub.s32 0, %v281
  %v283 = vrot.slane %v278, %v282
  %v285 = vadd.f32 %v274, %v283
  %v286 = vadd.f32 %v275, %v283
  %v287 = vadd.f32 %v276, %v283
  %v288 = vadd.f32 %v277, %v283
  %vm289 = vcmp.gt.f32.partialorder %v285, 0.0
  %vm290 = vcmp.gt.f32.partialorder %v286, 0.0
  %vm291 = vcmp.gt.f32.partialorder %v287, 0.0
  %vm292 = vcmp.gt.f32.partialorder %v288, 0.0
  %v293 = vmul.f32 %v285, 0.01
  %v294 = vmul.f32 %v286, 0.01
  %v295 = vmul.f32 %v287, 0.01
  %v296 = vmul.f32 %v288, 0.01
  %v297 = vsel %vm289, %v285, %v293
  %v298 = vsel %vm290, %v286, %v294
  %v299 = vsel %vm291, %v287, %v295
  %v300 = vsel %vm292, %v288, %v296
  %301 = vst [vmem:[%s4] sm:$0xff] %v297
  %302 = vst [vmem:[%s4 + $0x8] sm:$0xff] %v298
  %303 = vst [vmem:[%s4 + $0x10] sm:$0xff] %v299
  %304 = vst [vmem:[%s4 + $0x18] sm:$0xff] %v300
  // Predicated region
  $region18: #{_lambda_.1} parent=0 // pred_check
    _
  $region19: #{_lambda_.1} parent=0 // pred_check_branch
    %306 = sbr.rel (0) target = $region21
  $region20: #{_lambda_.1} parent=0 // pred_region
    _
  $region21: #{_lambda_.1} parent=0 // pred_fallthru
    _
  // Predicated region
  $region22: #{_lambda_.1} parent=0 // pred_check
    _
  $region23: #{_lambda_.1} parent=0 // pred_check_branch
    %308 = sbr.rel (0) target = $region25
  $region24: #{_lambda_.1} parent=0 // pred_region
    _
  $region25: #{_lambda_.1} parent=0 // pred_fallthru
    _

</llo_original>
